<compile_context>
chip_gen: v5e
topology: v5e:2x2
jax: 0.10.0
libtpu: 0.0.40
codegen_flags: <defaults>
</compile_context>

<pallas_src>
import functools

import numpy as np
import jax
import jax.numpy as jnp
from jax.experimental import pallas as pl
from jax.experimental.pallas import tpu as pltpu

# Module hyper-parameters (defaults of FourierEmbedder.__init__)
NUM_FREQS = 6
LOGSPACE = True
INCLUDE_INPUT = True
INCLUDE_PI = True


def make_frequencies():
    """Deterministic buffer, same as register_buffer('frequencies', ...)."""
    if LOGSPACE:
        freqs = 2.0 ** np.arange(NUM_FREQS, dtype=np.float32)
    else:
        freqs = np.linspace(1.0, 2.0 ** (NUM_FREQS - 1), NUM_FREQS,
                            dtype=np.float32)
    if INCLUDE_PI:
        freqs = freqs * np.float32(np.pi)
    return jnp.asarray(freqs, dtype=jnp.float32)


def _fourier_kernel(freqs_ref, x_ref, o_ref, *, include_input):
    # freqs_ref: (F, 1) f32   x_ref: (D, TN) f32   o_ref: (OUT, TN) f32
    # N (original rows) is on the lane axis -> all VPU work is lane-dense.
    D = x_ref.shape[0]
    F = freqs_ref.shape[0]

    x = x_ref[...]                       # (D, TN)
    fcol = freqs_ref[...]                # (F, 1)

    base = 0
    if include_input:
        o_ref[0:D, :] = x                # pass-through input rows
        base = D

    # D is tiny and static -> unrolled at trace time.
    for d in range(D):
        # Exact f32 VPU broadcast multiply: (1, TN) * (F, 1) -> (F, TN),
        # row f = x[d, :] * freqs[f]  (d-major / f-minor PyTorch order).
        ang = x[d:d + 1, :] * fcol
        o_ref[base + d * F: base + (d + 1) * F, :] = jnp.sin(ang)
        o_ref[base + D * F + d * F: base + D * F + (d + 1) * F, :] = jnp.cos(ang)


def _round_up(a, b):
    return (a + b - 1) // b * b


def fourier_embed(x, freqs, *, tn=2048):
    """Pallas implementation of FourierEmbedder.forward."""
    orig_shape = x.shape
    D = int(orig_shape[-1])
    F = int(freqs.shape[0])
    N = int(np.prod(orig_shape[:-1])) if len(orig_shape) > 1 else 1
    out_dim = (D if INCLUDE_INPUT else 0) + 2 * D * F

    # Transpose the problem: rows go on the lane axis.
    xt = x.reshape(N, D).astype(jnp.float32).T            # (D, N)

    # Lane tile: multiple of 128, capped by the (lane-padded) problem size.
    tn_eff = min(int(tn), _round_up(N, 128))
    tn_eff = max(128, _round_up(tn_eff, 128))
    Np = _round_up(N, tn_eff)
    if Np != N:
        # Cheap: x is the narrow (D-row) side; padded lanes are zeros so the
        # (discarded) extra columns stay finite.
        xt = jnp.pad(xt, ((0, 0), (0, Np - N)))

    freqs_col = freqs.astype(jnp.float32).reshape(F, 1)

    kernel = functools.partial(_fourier_kernel, include_input=INCLUDE_INPUT)

    # Per-block VMEM (double-buffered) at tn=2048: ~0.7 MiB -> far under the
    # default scoped-VMEM limit on v5e/v6e/v7x; no vmem_limit_bytes needed.
    out_t = pl.pallas_call(
        kernel,
        out_shape=jax.ShapeDtypeStruct((out_dim, Np), jnp.float32),
        grid_spec=pltpu.PrefetchScalarGridSpec(
            num_scalar_prefetch=0,
            grid=(Np // tn_eff,),
            in_specs=[
                pl.BlockSpec((F, 1), lambda i: (0, 0)),          # frequencies
                pl.BlockSpec((D, tn_eff), lambda i: (0, i)),     # x^T tile
            ],
            out_specs=pl.BlockSpec((out_dim, tn_eff), lambda i: (0, i)),
        ),
        compiler_params=pltpu.CompilerParams(
            dimension_semantics=("parallel",)),                  # megacore on v7x
    )(freqs_col, xt)

    out = out_t[:, :N].T                                   # back to (N, out_dim)
    return out.reshape(*orig_shape[:-1], out_dim)


def fourier_embed_ref(x, freqs):
    """Pure-JAX reference mirroring the PyTorch forward exactly."""
    embed = (x[..., None] * freqs).reshape(*x.shape[:-1], -1)
    if INCLUDE_INPUT:
        return jnp.concatenate([x, jnp.sin(embed), jnp.cos(embed)], axis=-1)
    return jnp.concatenate([jnp.sin(embed), jnp.cos(embed)], axis=-1)


if __name__ == "__main__":
    key = jax.random.PRNGKey(0)
    k1, k2 = jax.random.split(key)
    freqs = make_frequencies()

    # Small shape consistent with the module: batch=2, seq=8, 3-D coords.
    x = jax.random.normal(k1, (2, 8, 3), dtype=jnp.float32)
    out = jax.block_until_ready(fourier_embed(x, freqs))
    ref = fourier_embed_ref(x, freqs)
    assert out.shape == ref.shape == (2, 8, 3 + 2 * 3 * NUM_FREQS), out.shape
    np.testing.assert_allclose(np.asarray(out), np.asarray(ref),
                               rtol=1e-5, atol=1e-5)

    # Second (still small) shape that exercises multiple grid steps + padding.
    x2 = jax.random.normal(k2, (5, 250, 3), dtype=jnp.float32)
    out2 = jax.block_until_ready(fourier_embed(x2, freqs, tn=256))
    ref2 = fourier_embed_ref(x2, freqs)
    assert out2.shape == ref2.shape == (5, 250, 3 + 2 * 3 * NUM_FREQS)
    np.testing.assert_allclose(np.asarray(out2), np.asarray(ref2),
                               rtol=1e-5, atol=1e-5)

    print("KERNEL_OK")
</pallas_src>

<mosaic_0001>
module attributes {stable_mosaic.version = 11 : i64} {
  func.func @_fourier_kernel(%arg0: i32, %arg1: memref<6x1xf32, #tpu.memory_space<vmem>>, %arg2: memref<3x128xf32, #tpu.memory_space<vmem>>, %arg3: memref<39x128xf32, #tpu.memory_space<vmem>>) attributes {dimension_semantics = [#tpu.dimension_semantics<parallel>], iteration_bounds = array<i64: 1>, scalar_prefetch = 0 : i64, scratch_operands = 0 : i64, tpu.core_type = #tpu.core_type<tc>, window_params = [{pipeline_mode = #tpu.pipeline_mode<synchronous>, transform_indices = @transform_0, window_bounds = array<i64: 6, 1>}, {transform_indices = @transform_1, window_bounds = array<i64: 3, 128>}, {transform_indices = @transform_2, window_bounds = array<i64: 39, 128>}]} {
    %c0 = arith.constant 0 : index
    %c0_0 = arith.constant 0 : index
    %0 = vector.load %arg2[%c0, %c0_0] : memref<3x128xf32, #tpu.memory_space<vmem>>, vector<3x128xf32>
    %c0_1 = arith.constant 0 : index
    %c0_2 = arith.constant 0 : index
    %1 = vector.load %arg1[%c0_1, %c0_2] : memref<6x1xf32, #tpu.memory_space<vmem>>, vector<6x1xf32>
    %c0_3 = arith.constant 0 : index
    %c0_4 = arith.constant 0 : index
    %2 = vector.load %arg3[%c0_3, %c0_4] : memref<39x128xf32, #tpu.memory_space<vmem>>, vector<3x128xf32>
    tpu.vector_store %arg3[%c0_3, %c0_4], %0 {strides = array<i32>} : memref<39x128xf32, #tpu.memory_space<vmem>>, vector<3x128xf32>,
    %3 = vector.extract_strided_slice %0 {offsets = [0, 0], sizes = [1, 128], strides = [1, 1]} : vector<3x128xf32> to vector<1x128xf32>
    %4 = vector.broadcast %3 : vector<1x128xf32> to vector<6x128xf32>
    %5 = vector.broadcast %1 : vector<6x1xf32> to vector<6x128xf32>
    %6 = arith.mulf %4, %5 : vector<6x128xf32>
    %7 = math.sin %6 : vector<6x128xf32>
    %c3 = arith.constant 3 : index
    %c0_5 = arith.constant 0 : index
    %8 = vector.load %arg3[%c3, %c0_5] : memref<39x128xf32, #tpu.memory_space<vmem>>, vector<6x128xf32>
    tpu.vector_store %arg3[%c3, %c0_5], %7 {strides = array<i32>} : memref<39x128xf32, #tpu.memory_space<vmem>>, vector<6x128xf32>,
    %9 = math.cos %6 : vector<6x128xf32>
    %c21 = arith.constant 21 : index
    %c0_6 = arith.constant 0 : index
    %10 = vector.load %arg3[%c21, %c0_6] : memref<39x128xf32, #tpu.memory_space<vmem>>, vector<6x128xf32>
    tpu.vector_store %arg3[%c21, %c0_6], %9 {strides = array<i32>} : memref<39x128xf32, #tpu.memory_space<vmem>>, vector<6x128xf32>,
    %11 = vector.extract_strided_slice %0 {offsets = [1, 0], sizes = [1, 128], strides = [1, 1]} : vector<3x128xf32> to vector<1x128xf32>
    %12 = vector.broadcast %11 : vector<1x128xf32> to vector<6x128xf32>
    %13 = vector.broadcast %1 : vector<6x1xf32> to vector<6x128xf32>
    %14 = arith.mulf %12, %13 : vector<6x128xf32>
    %15 = math.sin %14 : vector<6x128xf32>
    %c9 = arith.constant 9 : index
    %c0_7 = arith.constant 0 : index
    %16 = vector.load %arg3[%c9, %c0_7] : memref<39x128xf32, #tpu.memory_space<vmem>>, vector<6x128xf32>
    tpu.vector_store %arg3[%c9, %c0_7], %15 {strides = array<i32>} : memref<39x128xf32, #tpu.memory_space<vmem>>, vector<6x128xf32>,
    %17 = math.cos %14 : vector<6x128xf32>
    %c27 = arith.constant 27 : index
    %c0_8 = arith.constant 0 : index
    %18 = vector.load %arg3[%c27, %c0_8] : memref<39x128xf32, #tpu.memory_space<vmem>>, vector<6x128xf32>
    tpu.vector_store %arg3[%c27, %c0_8], %17 {strides = array<i32>} : memref<39x128xf32, #tpu.memory_space<vmem>>, vector<6x128xf32>,
    %19 = vector.extract_strided_slice %0 {offsets = [2, 0], sizes = [1, 128], strides = [1, 1]} : vector<3x128xf32> to vector<1x128xf32>
    %20 = vector.broadcast %19 : vector<1x128xf32> to vector<6x128xf32>
    %21 = vector.broadcast %1 : vector<6x1xf32> to vector<6x128xf32>
    %22 = arith.mulf %20, %21 : vector<6x128xf32>
    %23 = math.sin %22 : vector<6x128xf32>
    %c15 = arith.constant 15 : index
    %c0_9 = arith.constant 0 : index
    %24 = vector.load %arg3[%c15, %c0_9] : memref<39x128xf32, #tpu.memory_space<vmem>>, vector<6x128xf32>
    tpu.vector_store %arg3[%c15, %c0_9], %23 {strides = array<i32>} : memref<39x128xf32, #tpu.memory_space<vmem>>, vector<6x128xf32>,
    %25 = math.cos %22 : vector<6x128xf32>
    %c33 = arith.constant 33 : index
    %c0_10 = arith.constant 0 : index
    %26 = vector.load %arg3[%c33, %c0_10] : memref<39x128xf32, #tpu.memory_space<vmem>>, vector<6x128xf32>
    tpu.vector_store %arg3[%c33, %c0_10], %25 {strides = array<i32>} : memref<39x128xf32, #tpu.memory_space<vmem>>, vector<6x128xf32>,
    return
  }
  func.func @transform_0(%arg0: i32) -> (i32, i32) {
    %c0_i32 = arith.constant 0 : i32
    %c0_i32_0 = arith.constant 0 : i32
    %c0_i32_1 = arith.constant 0 : i32
    return %c0_i32, %c0_i32_0 : i32, i32
  }
  func.func @transform_1(%arg0: i32) -> (i32, i32) {
    %c0_i32 = arith.constant 0 : i32
    %c0_i32_0 = arith.constant 0 : i32
    return %c0_i32, %arg0 : i32, i32
  }
  func.func @transform_2(%arg0: i32) -> (i32, i32) {
    %c0_i32 = arith.constant 0 : i32
    %c0_i32_0 = arith.constant 0 : i32
    return %c0_i32, %arg0 : i32, i32
  }
}

</mosaic_0001>

<llo_original>
// kernel: tpu_custom_call.1
$region0: #{tpu_custom_call.1}
  #allocation0 [shape = 'u32[]', space=smem, size = 0x4, offset = 0x4, fixed_abs, tag = 'smem constant byte address 0x4 - core index']
  #allocation1 [shape = 'u32[72,128]{1,0:T(1,128)}', space=vmem, size = 0x9000, scoped, tag = 'internal scratch']
  %s0 = inlined_call_operand.vmem [shape: f32[6,1], index: 0, kind: input, shape index: {}]
  %s1 = inlined_call_operand.vmem [shape: f32[3,128], index: 1, kind: input, shape index: {}]
  %s2 = inlined_call_operand.hbm [shape: f32[39,128], index: 2, kind: output, shape index: {}]
  %s3 = sld [smem:[#allocation0]]
  $region18: #{tpu_custom_call.1} parent=0
    _
  %s5 = ssub.s32 1, %s3
  %s6 = scalar_select 0, %s5, %s3
  $region1: #{tpu_custom_call.1} parent=0
    #allocation2 [shape = 'u8[20480]{0}', space=vmem, size = 0x5000, scoped, tag = 'output window, operand 0, single buffered']
    #allocation3 [shape = 's32[1]{0}', space=sflag, size = 0x4, scoped, tag = 'scoped memory for tpu_custom_call.1']
    %7 = vsyncpa [#allocation3], 0
    // Predicated region
    $region2: #{tpu_custom_call.1} parent=1 // pred_check
      _
    $region3: #{tpu_custom_call.1} parent=1 // pred_check_branch
      %9 = sbr.rel (0) target = $region5
    $region4: #{tpu_custom_call.1} parent=1 // pred_region
      _
    $region5: #{tpu_custom_call.1} parent=1 // pred_fallthru
      _
    // Predicated region
    $region6: #{tpu_custom_call.1} parent=1 // pred_check
      _
    $region7: #{tpu_custom_call.1} parent=1 // pred_check_branch
      %11 = sbr.rel (0) target = $region9
    $region8: #{tpu_custom_call.1} parent=1 // pred_region
      _
    $region9: #{tpu_custom_call.1} parent=1 // pred_fallthru
      _
    %v12 = vld [vmem:[%s1] sm:$0x7]
    %v13 = vld [vmem:[%s0] sm:$0x3f]
    %14 = vst [vmem:[#allocation2] sm:$0x7] %v12
    %v15 = vperm.slane %v12, 0
    %17 = vset.pattern.permute.xlu0 0
    %18 = vperm.xlu0 %17, %v13
    %v19 = vpop.permute.xlu0 %18
    %v21 = vmul.f32 %v15, %v19
    %v22 = vand.u32 2147483647, %v21
    %vm23 = vcmp.le.f32.partialorder %v22, 0.7853982
    %vm24 = vcmp.lt.s32.totalorder %v21, 0
    %v25 = vand.u32 %v21, 2139095040
    %v26 = vshrl.u32 %v25, 23
    %v27 = vsub.s32 %v26, 127
    %v28 = vand.u32 2147483647, %v21
    %v29 = vand.u32 %v28, 8388607
    %v30 = vor.u32 %v29, 8388608
    %v31 = vsub.s32 0, %v30
    %v32 = vadd.s32 %v27, 1
    %vm33 = vcmp.gt.s32.totalorder %v32, 0
    %v34 = vsel %vm33, %v32, 0
    %v35 = vshrl.u32 %v34, 5
    %v36 = vand.u32 %v34, 31
    %v37 = vsub.s32 32, %v36
    %v38 = vshrl.u32 683565275, %v37
    %v39 = vshll.u32 683565275, %v36
    %v40 = vshrl.u32 2475754826, %v37
    %v41 = vor.u32 %v39, %v40
    %v42 = vshll.u32 2475754826, %v36
    %v43 = vshrl.u32 2131351028, %v37
    %v44 = vor.u32 %v42, %v43
    %v45 = vshll.u32 2131351028, %v36
    %v46 = vshrl.u32 2102212464, %v37
    %v47 = vor.u32 %v45, %v46
    %v48 = vshll.u32 2102212464, %v36
    %v49 = vshrl.u32 920167782, %v37
    %v50 = vor.u32 %v48, %v49
    %v51 = vshll.u32 920167782, %v36
    %v52 = vshrl.u32 1326507024, %v37
    %v53 = vor.u32 %v51, %v52
    %vm54 = vcmp.lt.s32.totalorder %v35, 1
    %vm55 = vcmp.lt.s32.totalorder %v35, 2
    %vm56 = vcmp.lt.s32.totalorder %v35, 3
    %vm57 = vcmp.lt.s32.totalorder %v35, 4
    %v58 = vsel %vm54, %v38, %v41
    %v59 = vsel %vm57, %v47, 2102212464
    %v60 = vsel %vm56, %v44, %v59
    %v61 = vsel %vm55, %v58, %v60
    %v62 = vsel %vm54, %v41, %v44
    %v63 = vsel %vm57, %v50, 920167782
    %v64 = vsel %vm56, %v47, %v63
    %v65 = vsel %vm55, %v62, %v64
    %v66 = vsel %vm54, %v44, %v47
    %v67 = vsel %vm57, %v53, 1326507024
    %v68 = vsel %vm56, %v50, %v67
    %v69 = vsel %vm55, %v66, %v68
    %v70 = vshll.u32 %v30, 8
    %v71 = vand.u32 %v70, 65535
    %v72 = vshrl.u32 %v70, 16
    %v73 = vand.u32 %v69, 65535
    %v74 = vshrl.u32 %v69, 16
    %v75 = vmul.u32 %v71, %v73
    %v76 = vmul.u32 %v71, %v74
    %v77 = vmul.u32 %v72, %v73
    %v78 = vmul.u32 %v72, %v74
    %v79 = vshll.u32 %v76, 16
    %v80 = vshrl.u32 %v76, 16
    %v81 = vshll.u32 %v77, 16
    %v82 = vshrl.u32 %v77, 16
    %vm83 = vc.u32 %v75, %v79
    %v84 = vsel %vm83, 1, 0
    %v85 = vadd.s32 %v75, %v79
    %v86 = vadd.s32 %v78, %v84
    %vm87 = vc.u32 %v85, %v81
    %v88 = vsel %vm87, 1, 0
    %v89 = vadd.s32 %v85, %v81
    %v90 = vadd.s32 %v86, %v88
    %v91 = vadd.s32 %v90, %v80
    %v92 = vadd.s32 %v91, %v82
    %v93 = vand.u32 %v70, 65535
    %v94 = vshrl.u32 %v70, 16
    %v95 = vand.u32 %v65, 65535
    %v96 = vshrl.u32 %v65, 16
    %v97 = vmul.u32 %v93, %v95
    %v98 = vmul.u32 %v93, %v96
    %v99 = vmul.u32 %v94, %v95
    %v100 = vmul.u32 %v94, %v96
    %v101 = vshll.u32 %v98, 16
    %v102 = vshrl.u32 %v98, 16
    %v103 = vshll.u32 %v99, 16
    %v104 = vshrl.u32 %v99, 16
    %vm105 = vc.u32 %v97, %v101
    %v106 = vsel %vm105, 1, 0
    %v107 = vadd.s32 %v97, %v101
    %v108 = vadd.s32 %v100, %v106
    %vm109 = vc.u32 %v107, %v103
    %v110 = vsel %vm109, 1, 0
    %v111 = vadd.s32 %v107, %v103
    %v112 = vadd.s32 %v108, %v110
    %v113 = vadd.s32 %v112, %v102
    %v114 = vadd.s32 %v113, %v104
    %v115 = vmul.u32 %v70, %v61
    %v116 = vadd.s32 %v92, %v111
    %vm117 = vc.u32 %v92, %v111
    %v118 = vadd.s32 %v114, 1
    %v119 = vsel %vm117, %v118, %v114
    %v120 = vadd.s32 %v115, %v119
    %v121 = vadd.s32 %v120, 536870912
    %v122 = vshrl.u32 %v121, 30
    %v123 = vshll.u32 %v122, 30
    %v124 = vsub.s32 %v120, %v123
    %vm125 = vcmp.lt.s32.totalorder %v124, 0
    %v126 = vsub.s32 0, %v124
    %v127 = vsel %vm125, %v126, %v124
    %v128 = vclz %v127
    %v129 = vsub.s32 %v128, 2
    %vm130 = vcmp.gt.s32.totalorder 0, %v129
    %v131 = vsel %vm130, 0, %v129
    %v132 = vsub.s32 32, %v131
    %v133 = vshll.u32 %v124, %v131
    %v134 = vshrl.u32 %v116, %v132
    %v135 = vor.u32 %v133, %v134
    %v136 = vsub.s32 4294967266, %v131
    %v137 = vadd.s32 %v136, 127
    %v138 = vshll.u32 %v137, 23
    %v139 = vor.u32 4788187, %v138
    %v140 = vand.u32 2147483647, %v139
    %v142 = vcvt.s32.f32 %v135
    %v143 = vmul.f32 %v142, %v140
    %v144 = vxor.u32 %v143, 2147483648
    %v145 = vsel %vm24, %v144, %v143
    %v146 = vsub.s32 4, %v122
    %v147 = vsel %vm24, %v146, %v122
    %v148 = vsel %vm23, %v21, %v145
    %v149 = vsel %vm23, 0, %v147
    %v150 = vmul.f32 %v148, %v148
    %v151 = vmul.f32 %v150, -0.001358992
    %v152 = vadd.f32 %v151, 0.041655596
    %v153 = vmul.f32 %v150, %v152
    %v154 = vadd.f32 %v153, -0.4999988
    %v155 = vmul.f32 %v150, %v154
    %v156 = vadd.f32 1.0, %v155
    %v157 = vmul.f32 %v148, %v148
    %v158 = vmul.f32 %v157, -0.00019511016
    %v159 = vadd.f32 %v158, 0.008332121
    %v160 = vmul.f32 %v157, %v159
    %v161 = vadd.f32 %v160, -0.16666654
    %v162 = vmul.f32 %v157, %v161
    %v163 = vadd.f32 %v162, 1.0
    %v164 = vmul.f32 %v163, %v148
    %vm165 = vweird.f32 %v21
    %v166 = vadd.s32 %v149, 3
    %v167 = vand.u32 %v166, 3
    %vm168 = vcmp.lt.s32.totalorder %v167, 2
    %vm169 = vcmp.eq.s32.totalorder %v167, 0
    %v170 = vxor.u32 %v164, 2147483648
    %v171 = vsel %vm169, %v156, %v170
    %vm172 = vcmp.eq.s32.totalorder %v167, 2
    %v173 = vxor.u32 %v156, 2147483648
    %v174 = vsel %vm172, %v173, %v164
    %v175 = vsel %vm168, %v171, %v174
    %v176 = vsel %vm165, nan, %v175
    %177 = vst [vmem:[#allocation2 + $0x3] sm:$0x3f] %v176
    %v178 = vand.u32 2147483647, %v21
    %vm179 = vcmp.le.f32.partialorder %v178, 0.7853982
    %vm180 = vcmp.lt.s32.totalorder %v21, 0
    %v181 = vand.u32 %v21, 2139095040
    %v182 = vshrl.u32 %v181, 23
    %v183 = vsub.s32 %v182, 127
    %v184 = vand.u32 2147483647, %v21
    %v185 = vand.u32 %v184, 8388607
    %v186 = vor.u32 %v185, 8388608
    %v187 = vsub.s32 0, %v186
    %v188 = vadd.s32 %v183, 1
    %vm189 = vcmp.gt.s32.totalorder %v188, 0
    %v190 = vsel %vm189, %v188, 0
    %v191 = vshrl.u32 %v190, 5
    %v192 = vand.u32 %v190, 31
    %v193 = vsub.s32 32, %v192
    %v194 = vshrl.u32 683565275, %v193
    %v195 = vshll.u32 683565275, %v192
    %v196 = vshrl.u32 2475754826, %v193
    %v197 = vor.u32 %v195, %v196
    %v198 = vshll.u32 2475754826, %v192
    %v199 = vshrl.u32 2131351028, %v193
    %v200 = vor.u32 %v198, %v199
    %v201 = vshll.u32 2131351028, %v192
    %v202 = vshrl.u32 2102212464, %v193
    %v203 = vor.u32 %v201, %v202
    %v204 = vshll.u32 2102212464, %v192
    %v205 = vshrl.u32 920167782, %v193
    %v206 = vor.u32 %v204, %v205
    %v207 = vshll.u32 920167782, %v192
    %v208 = vshrl.u32 1326507024, %v193
    %v209 = vor.u32 %v207, %v208
    %vm210 = vcmp.lt.s32.totalorder %v191, 1
    %vm211 = vcmp.lt.s32.totalorder %v191, 2
    %vm212 = vcmp.lt.s32.totalorder %v191, 3
    %vm213 = vcmp.lt.s32.totalorder %v191, 4
    %v214 = vsel %vm210, %v194, %v197
    %v215 = vsel %vm213, %v203, 2102212464
    %v216 = vsel %vm212, %v200, %v215
    %v217 = vsel %vm211, %v214, %v216
    %v218 = vsel %vm210, %v197, %v200
    %v219 = vsel %vm213, %v206, 920167782
    %v220 = vsel %vm212, %v203, %v219
    %v221 = vsel %vm211, %v218, %v220
    %v222 = vsel %vm210, %v200, %v203
    %v223 = vsel %vm213, %v209, 1326507024
    %v224 = vsel %vm212, %v206, %v223
    %v225 = vsel %vm211, %v222, %v224
    %v226 = vshll.u32 %v186, 8
    %v227 = vand.u32 %v226, 65535
    %v228 = vshrl.u32 %v226, 16
    %v229 = vand.u32 %v225, 65535
    %v230 = vshrl.u32 %v225, 16
    %v231 = vmul.u32 %v227, %v229
    %v232 = vmul.u32 %v227, %v230
    %v233 = vmul.u32 %v228, %v229
    %v234 = vmul.u32 %v228, %v230
    %v235 = vshll.u32 %v232, 16
    %v236 = vshrl.u32 %v232, 16
    %v237 = vshll.u32 %v233, 16
    %v238 = vshrl.u32 %v233, 16
    %vm239 = vc.u32 %v231, %v235
    %v240 = vsel %vm239, 1, 0
    %v241 = vadd.s32 %v231, %v235
    %v242 = vadd.s32 %v234, %v240
    %vm243 = vc.u32 %v241, %v237
    %v244 = vsel %vm243, 1, 0
    %v245 = vadd.s32 %v241, %v237
    %v246 = vadd.s32 %v242, %v244
    %v247 = vadd.s32 %v246, %v236
    %v248 = vadd.s32 %v247, %v238
    %v249 = vand.u32 %v226, 65535
    %v250 = vshrl.u32 %v226, 16
    %v251 = vand.u32 %v221, 65535
    %v252 = vshrl.u32 %v221, 16
    %v253 = vmul.u32 %v249, %v251
    %v254 = vmul.u32 %v249, %v252
    %v255 = vmul.u32 %v250, %v251
    %v256 = vmul.u32 %v250, %v252
    %v257 = vshll.u32 %v254, 16
    %v258 = vshrl.u32 %v254, 16
    %v259 = vshll.u32 %v255, 16
    %v260 = vshrl.u32 %v255, 16
    %vm261 = vc.u32 %v253, %v257
    %v262 = vsel %vm261, 1, 0
    %v263 = vadd.s32 %v253, %v257
    %v264 = vadd.s32 %v256, %v262
    %vm265 = vc.u32 %v263, %v259
    %v266 = vsel %vm265, 1, 0
    %v267 = vadd.s32 %v263, %v259
    %v268 = vadd.s32 %v264, %v266
    %v269 = vadd.s32 %v268, %v258
    %v270 = vadd.s32 %v269, %v260
    %v271 = vmul.u32 %v226, %v217
    %v272 = vadd.s32 %v248, %v267
    %vm273 = vc.u32 %v248, %v267
    %v274 = vadd.s32 %v270, 1
    %v275 = vsel %vm273, %v274, %v270
    %v276 = vadd.s32 %v271, %v275
    %v277 = vadd.s32 %v276, 536870912
    %v278 = vshrl.u32 %v277, 30
    %v279 = vshll.u32 %v278, 30
    %v280 = vsub.s32 %v276, %v279
    %vm281 = vcmp.lt.s32.totalorder %v280, 0
    %v282 = vsub.s32 0, %v280
    %v283 = vsel %vm281, %v282, %v280
    %v284 = vclz %v283
    %v285 = vsub.s32 %v284, 2
    %vm286 = vcmp.gt.s32.totalorder 0, %v285
    %v287 = vsel %vm286, 0, %v285
    %v288 = vsub.s32 32, %v287
    %v289 = vshll.u32 %v280, %v287
    %v290 = vshrl.u32 %v272, %v288
    %v291 = vor.u32 %v289, %v290
    %v292 = vsub.s32 4294967266, %v287
    %v293 = vadd.s32 %v292, 127
    %v294 = vshll.u32 %v293, 23
    %v295 = vor.u32 4788187, %v294
    %v296 = vand.u32 2147483647, %v295
    %v298 = vcvt.s32.f32 %v291
    %v299 = vmul.f32 %v298, %v296
    %v300 = vxor.u32 %v299, 2147483648
    %v301 = vsel %vm180, %v300, %v299
    %v302 = vsub.s32 4, %v278
    %v303 = vsel %vm180, %v302, %v278
    %v304 = vsel %vm179, %v21, %v301
    %v305 = vsel %vm179, 0, %v303
    %v306 = vmul.f32 %v304, %v304
    %v307 = vmul.f32 %v306, -0.001358992
    %v308 = vadd.f32 %v307, 0.041655596
    %v309 = vmul.f32 %v306, %v308
    %v310 = vadd.f32 %v309, -0.4999988
    %v311 = vmul.f32 %v306, %v310
    %v312 = vadd.f32 1.0, %v311
    %v313 = vmul.f32 %v304, %v304
    %v314 = vmul.f32 %v313, -0.00019511016
    %v315 = vadd.f32 %v314, 0.008332121
    %v316 = vmul.f32 %v313, %v315
    %v317 = vadd.f32 %v316, -0.16666654
    %v318 = vmul.f32 %v313, %v317
    %v319 = vadd.f32 %v318, 1.0
    %v320 = vmul.f32 %v319, %v304
    %vm321 = vweird.f32 %v21
    %v322 = vand.u32 %v305, 3
    %vm323 = vcmp.lt.s32.totalorder %v322, 2
    %vm324 = vcmp.eq.s32.totalorder %v322, 0
    %v325 = vxor.u32 %v320, 2147483648
    %v326 = vsel %vm324, %v312, %v325
    %vm327 = vcmp.eq.s32.totalorder %v322, 2
    %v328 = vxor.u32 %v312, 2147483648
    %v329 = vsel %vm327, %v328, %v320
    %v330 = vsel %vm323, %v326, %v329
    %v331 = vsel %vm321, nan, %v330
    %332 = vst [vmem:[#allocation2 + $0x15] sm:$0x3f] %v331
    %v333 = vperm.slane %v12, 1
    %v334 = vmul.f32 %v333, %v19
    %v335 = vand.u32 2147483647, %v334
    %vm336 = vcmp.le.f32.partialorder %v335, 0.7853982
    %vm337 = vcmp.lt.s32.totalorder %v334, 0
    %v338 = vand.u32 %v334, 2139095040
    %v339 = vshrl.u32 %v338, 23
    %v340 = vsub.s32 %v339, 127
    %v341 = vand.u32 2147483647, %v334
    %v342 = vand.u32 %v341, 8388607
    %v343 = vor.u32 %v342, 8388608
    %v344 = vsub.s32 0, %v343
    %v345 = vadd.s32 %v340, 1
    %vm346 = vcmp.gt.s32.totalorder %v345, 0
    %v347 = vsel %vm346, %v345, 0
    %v348 = vshrl.u32 %v347, 5
    %v349 = vand.u32 %v347, 31
    %v350 = vsub.s32 32, %v349
    %v351 = vshrl.u32 683565275, %v350
    %v352 = vshll.u32 683565275, %v349
    %v353 = vshrl.u32 2475754826, %v350
    %v354 = vor.u32 %v352, %v353
    %v355 = vshll.u32 2475754826, %v349
    %v356 = vshrl.u32 2131351028, %v350
    %v357 = vor.u32 %v355, %v356
    %v358 = vshll.u32 2131351028, %v349
    %v359 = vshrl.u32 2102212464, %v350
    %v360 = vor.u32 %v358, %v359
    %v361 = vshll.u32 2102212464, %v349
    %v362 = vshrl.u32 920167782, %v350
    %v363 = vor.u32 %v361, %v362
    %v364 = vshll.u32 920167782, %v349
    %v365 = vshrl.u32 1326507024, %v350
    %v366 = vor.u32 %v364, %v365
    %vm367 = vcmp.lt.s32.totalorder %v348, 1
    %vm368 = vcmp.lt.s32.totalorder %v348, 2
    %vm369 = vcmp.lt.s32.totalorder %v348, 3
    %vm370 = vcmp.lt.s32.totalorder %v348, 4
    %v371 = vsel %vm367, %v351, %v354
    %v372 = vsel %vm370, %v360, 2102212464
    %v373 = vsel %vm369, %v357, %v372
    %v374 = vsel %vm368, %v371, %v373
    %v375 = vsel %vm367, %v354, %v357
    %v376 = vsel %vm370, %v363, 920167782
    %v377 = vsel %vm369, %v360, %v376
    %v378 = vsel %vm368, %v375, %v377
    %v379 = vsel %vm367, %v357, %v360
    %v380 = vsel %vm370, %v366, 1326507024
    %v381 = vsel %vm369, %v363, %v380
    %v382 = vsel %vm368, %v379, %v381
    %v383 = vshll.u32 %v343, 8
    %v384 = vand.u32 %v383, 65535
    %v385 = vshrl.u32 %v383, 16
    %v386 = vand.u32 %v382, 65535
    %v387 = vshrl.u32 %v382, 16
    %v388 = vmul.u32 %v384, %v386
    %v389 = vmul.u32 %v384, %v387
    %v390 = vmul.u32 %v385, %v386
    %v391 = vmul.u32 %v385, %v387
    %v392 = vshll.u32 %v389, 16
    %v393 = vshrl.u32 %v389, 16
    %v394 = vshll.u32 %v390, 16
    %v395 = vshrl.u32 %v390, 16
    %vm396 = vc.u32 %v388, %v392
    %v397 = vsel %vm396, 1, 0
    %v398 = vadd.s32 %v388, %v392
    %v399 = vadd.s32 %v391, %v397
    %vm400 = vc.u32 %v398, %v394
    %v401 = vsel %vm400, 1, 0
    %v402 = vadd.s32 %v398, %v394
    %v403 = vadd.s32 %v399, %v401
    %v404 = vadd.s32 %v403, %v393
    %v405 = vadd.s32 %v404, %v395
    %v406 = vand.u32 %v383, 65535
    %v407 = vshrl.u32 %v383, 16
    %v408 = vand.u32 %v378, 65535
    %v409 = vshrl.u32 %v378, 16
    %v410 = vmul.u32 %v406, %v408
    %v411 = vmul.u32 %v406, %v409
    %v412 = vmul.u32 %v407, %v408
    %v413 = vmul.u32 %v407, %v409
    %v414 = vshll.u32 %v411, 16
    %v415 = vshrl.u32 %v411, 16
    %v416 = vshll.u32 %v412, 16
    %v417 = vshrl.u32 %v412, 16
    %vm418 = vc.u32 %v410, %v414
    %v419 = vsel %vm418, 1, 0
    %v420 = vadd.s32 %v410, %v414
    %v421 = vadd.s32 %v413, %v419
    %vm422 = vc.u32 %v420, %v416
    %v423 = vsel %vm422, 1, 0
    %v424 = vadd.s32 %v420, %v416
    %v425 = vadd.s32 %v421, %v423
    %v426 = vadd.s32 %v425, %v415
    %v427 = vadd.s32 %v426, %v417
    %v428 = vmul.u32 %v383, %v374
    %v429 = vadd.s32 %v405, %v424
    %vm430 = vc.u32 %v405, %v424
    %v431 = vadd.s32 %v427, 1
    %v432 = vsel %vm430, %v431, %v427
    %v433 = vadd.s32 %v428, %v432
    %v434 = vadd.s32 %v433, 536870912
    %v435 = vshrl.u32 %v434, 30
    %v436 = vshll.u32 %v435, 30
    %v437 = vsub.s32 %v433, %v436
    %vm438 = vcmp.lt.s32.totalorder %v437, 0
    %v439 = vsub.s32 0, %v437
    %v440 = vsel %vm438, %v439, %v437
    %v441 = vclz %v440
    %v442 = vsub.s32 %v441, 2
    %vm443 = vcmp.gt.s32.totalorder 0, %v442
    %v444 = vsel %vm443, 0, %v442
    %v445 = vsub.s32 32, %v444
    %v446 = vshll.u32 %v437, %v444
    %v447 = vshrl.u32 %v429, %v445
    %v448 = vor.u32 %v446, %v447
    %v449 = vsub.s32 4294967266, %v444
    %v450 = vadd.s32 %v449, 127
    %v451 = vshll.u32 %v450, 23
    %v452 = vor.u32 4788187, %v451
    %v453 = vand.u32 2147483647, %v452
    %v455 = vcvt.s32.f32 %v448
    %v456 = vmul.f32 %v455, %v453
    %v457 = vxor.u32 %v456, 2147483648
    %v458 = vsel %vm337, %v457, %v456
    %v459 = vsub.s32 4, %v435
    %v460 = vsel %vm337, %v459, %v435
    %v461 = vsel %vm336, %v334, %v458
    %v462 = vsel %vm336, 0, %v460
    %v463 = vmul.f32 %v461, %v461
    %v464 = vmul.f32 %v463, -0.001358992
    %v465 = vadd.f32 %v464, 0.041655596
    %v466 = vmul.f32 %v463, %v465
    %v467 = vadd.f32 %v466, -0.4999988
    %v468 = vmul.f32 %v463, %v467
    %v469 = vadd.f32 1.0, %v468
    %v470 = vmul.f32 %v461, %v461
    %v471 = vmul.f32 %v470, -0.00019511016
    %v472 = vadd.f32 %v471, 0.008332121
    %v473 = vmul.f32 %v470, %v472
    %v474 = vadd.f32 %v473, -0.16666654
    %v475 = vmul.f32 %v470, %v474
    %v476 = vadd.f32 %v475, 1.0
    %v477 = vmul.f32 %v476, %v461
    %vm478 = vweird.f32 %v334
    %v479 = vadd.s32 %v462, 3
    %v480 = vand.u32 %v479, 3
    %vm481 = vcmp.lt.s32.totalorder %v480, 2
    %vm482 = vcmp.eq.s32.totalorder %v480, 0
    %v483 = vxor.u32 %v477, 2147483648
    %v484 = vsel %vm482, %v469, %v483
    %vm485 = vcmp.eq.s32.totalorder %v480, 2
    %v486 = vxor.u32 %v469, 2147483648
    %v487 = vsel %vm485, %v486, %v477
    %v488 = vsel %vm481, %v484, %v487
    %v489 = vsel %vm478, nan, %v488
    %490 = vst [vmem:[#allocation2 + $0x9] sm:$0x3f] %v489
    %v491 = vand.u32 2147483647, %v334
    %vm492 = vcmp.le.f32.partialorder %v491, 0.7853982
    %vm493 = vcmp.lt.s32.totalorder %v334, 0
    %v494 = vand.u32 %v334, 2139095040
    %v495 = vshrl.u32 %v494, 23
    %v496 = vsub.s32 %v495, 127
    %v497 = vand.u32 2147483647, %v334
    %v498 = vand.u32 %v497, 8388607
    %v499 = vor.u32 %v498, 8388608
    %v500 = vsub.s32 0, %v499
    %v501 = vadd.s32 %v496, 1
    %vm502 = vcmp.gt.s32.totalorder %v501, 0
    %v503 = vsel %vm502, %v501, 0
    %v504 = vshrl.u32 %v503, 5
    %v505 = vand.u32 %v503, 31
    %v506 = vsub.s32 32, %v505
    %v507 = vshrl.u32 683565275, %v506
    %v508 = vshll.u32 683565275, %v505
    %v509 = vshrl.u32 2475754826, %v506
    %v510 = vor.u32 %v508, %v509
    %v511 = vshll.u32 2475754826, %v505
    %v512 = vshrl.u32 2131351028, %v506
    %v513 = vor.u32 %v511, %v512
    %v514 = vshll.u32 2131351028, %v505
    %v515 = vshrl.u32 2102212464, %v506
    %v516 = vor.u32 %v514, %v515
    %v517 = vshll.u32 2102212464, %v505
    %v518 = vshrl.u32 920167782, %v506
    %v519 = vor.u32 %v517, %v518
    %v520 = vshll.u32 920167782, %v505
    %v521 = vshrl.u32 1326507024, %v506
    %v522 = vor.u32 %v520, %v521
    %vm523 = vcmp.lt.s32.totalorder %v504, 1
    %vm524 = vcmp.lt.s32.totalorder %v504, 2
    %vm525 = vcmp.lt.s32.totalorder %v504, 3
    %vm526 = vcmp.lt.s32.totalorder %v504, 4
    %v527 = vsel %vm523, %v507, %v510
    %v528 = vsel %vm526, %v516, 2102212464
    %v529 = vsel %vm525, %v513, %v528
    %v530 = vsel %vm524, %v527, %v529
    %v531 = vsel %vm523, %v510, %v513
    %v532 = vsel %vm526, %v519, 920167782
    %v533 = vsel %vm525, %v516, %v532
    %v534 = vsel %vm524, %v531, %v533
    %v535 = vsel %vm523, %v513, %v516
    %v536 = vsel %vm526, %v522, 1326507024
    %v537 = vsel %vm525, %v519, %v536
    %v538 = vsel %vm524, %v535, %v537
    %v539 = vshll.u32 %v499, 8
    %v540 = vand.u32 %v539, 65535
    %v541 = vshrl.u32 %v539, 16
    %v542 = vand.u32 %v538, 65535
    %v543 = vshrl.u32 %v538, 16
    %v544 = vmul.u32 %v540, %v542
    %v545 = vmul.u32 %v540, %v543
    %v546 = vmul.u32 %v541, %v542
    %v547 = vmul.u32 %v541, %v543
    %v548 = vshll.u32 %v545, 16
    %v549 = vshrl.u32 %v545, 16
    %v550 = vshll.u32 %v546, 16
    %v551 = vshrl.u32 %v546, 16
    %vm552 = vc.u32 %v544, %v548
    %v553 = vsel %vm552, 1, 0
    %v554 = vadd.s32 %v544, %v548
    %v555 = vadd.s32 %v547, %v553
    %vm556 = vc.u32 %v554, %v550
    %v557 = vsel %vm556, 1, 0
    %v558 = vadd.s32 %v554, %v550
    %v559 = vadd.s32 %v555, %v557
    %v560 = vadd.s32 %v559, %v549
    %v561 = vadd.s32 %v560, %v551
    %v562 = vand.u32 %v539, 65535
    %v563 = vshrl.u32 %v539, 16
    %v564 = vand.u32 %v534, 65535
    %v565 = vshrl.u32 %v534, 16
    %v566 = vmul.u32 %v562, %v564
    %v567 = vmul.u32 %v562, %v565
    %v568 = vmul.u32 %v563, %v564
    %v569 = vmul.u32 %v563, %v565
    %v570 = vshll.u32 %v567, 16
    %v571 = vshrl.u32 %v567, 16
    %v572 = vshll.u32 %v568, 16
    %v573 = vshrl.u32 %v568, 16
    %vm574 = vc.u32 %v566, %v570
    %v575 = vsel %vm574, 1, 0
    %v576 = vadd.s32 %v566, %v570
    %v577 = vadd.s32 %v569, %v575
    %vm578 = vc.u32 %v576, %v572
    %v579 = vsel %vm578, 1, 0
    %v580 = vadd.s32 %v576, %v572
    %v581 = vadd.s32 %v577, %v579
    %v582 = vadd.s32 %v581, %v571
    %v583 = vadd.s32 %v582, %v573
    %v584 = vmul.u32 %v539, %v530
    %v585 = vadd.s32 %v561, %v580
    %vm586 = vc.u32 %v561, %v580
    %v587 = vadd.s32 %v583, 1
    %v588 = vsel %vm586, %v587, %v583
    %v589 = vadd.s32 %v584, %v588
    %v590 = vadd.s32 %v589, 536870912
    %v591 = vshrl.u32 %v590, 30
    %v592 = vshll.u32 %v591, 30
    %v593 = vsub.s32 %v589, %v592
    %vm594 = vcmp.lt.s32.totalorder %v593, 0
    %v595 = vsub.s32 0, %v593
    %v596 = vsel %vm594, %v595, %v593
    %v597 = vclz %v596
    %v598 = vsub.s32 %v597, 2
    %vm599 = vcmp.gt.s32.totalorder 0, %v598
    %v600 = vsel %vm599, 0, %v598
    %v601 = vsub.s32 32, %v600
    %v602 = vshll.u32 %v593, %v600
    %v603 = vshrl.u32 %v585, %v601
    %v604 = vor.u32 %v602, %v603
    %v605 = vsub.s32 4294967266, %v600
    %v606 = vadd.s32 %v605, 127
    %v607 = vshll.u32 %v606, 23
    %v608 = vor.u32 4788187, %v607
    %v609 = vand.u32 2147483647, %v608
    %v611 = vcvt.s32.f32 %v604
    %v612 = vmul.f32 %v611, %v609
    %v613 = vxor.u32 %v612, 2147483648
    %v614 = vsel %vm493, %v613, %v612
    %v615 = vsub.s32 4, %v591
    %v616 = vsel %vm493, %v615, %v591
    %v617 = vsel %vm492, %v334, %v614
    %v618 = vsel %vm492, 0, %v616
    %v619 = vmul.f32 %v617, %v617
    %v620 = vmul.f32 %v619, -0.001358992
    %v621 = vadd.f32 %v620, 0.041655596
    %v622 = vmul.f32 %v619, %v621
    %v623 = vadd.f32 %v622, -0.4999988
    %v624 = vmul.f32 %v619, %v623
    %v625 = vadd.f32 1.0, %v624
    %v626 = vmul.f32 %v617, %v617
    %v627 = vmul.f32 %v626, -0.00019511016
    %v628 = vadd.f32 %v627, 0.008332121
    %v629 = vmul.f32 %v626, %v628
    %v630 = vadd.f32 %v629, -0.16666654
    %v631 = vmul.f32 %v626, %v630
    %v632 = vadd.f32 %v631, 1.0
    %v633 = vmul.f32 %v632, %v617
    %vm634 = vweird.f32 %v334
    %v635 = vand.u32 %v618, 3
    %vm636 = vcmp.lt.s32.totalorder %v635, 2
    %vm637 = vcmp.eq.s32.totalorder %v635, 0
    %v638 = vxor.u32 %v633, 2147483648
    %v639 = vsel %vm637, %v625, %v638
    %vm640 = vcmp.eq.s32.totalorder %v635, 2
    %v641 = vxor.u32 %v625, 2147483648
    %v642 = vsel %vm640, %v641, %v633
    %v643 = vsel %vm636, %v639, %v642
    %v644 = vsel %vm634, nan, %v643
    %645 = vst [vmem:[#allocation2 + $0x1b] sm:$0x3f] %v644
    %v646 = vperm.slane %v12, 2
    %v647 = vmul.f32 %v646, %v19
    %v648 = vand.u32 2147483647, %v647
    %vm649 = vcmp.le.f32.partialorder %v648, 0.7853982
    %vm650 = vcmp.lt.s32.totalorder %v647, 0
    %v651 = vand.u32 %v647, 2139095040
    %v652 = vshrl.u32 %v651, 23
    %v653 = vsub.s32 %v652, 127
    %v654 = vand.u32 2147483647, %v647
    %v655 = vand.u32 %v654, 8388607
    %v656 = vor.u32 %v655, 8388608
    %v657 = vsub.s32 0, %v656
    %v658 = vadd.s32 %v653, 1
    %vm659 = vcmp.gt.s32.totalorder %v658, 0
    %v660 = vsel %vm659, %v658, 0
    %v661 = vshrl.u32 %v660, 5
    %v662 = vand.u32 %v660, 31
    %v663 = vsub.s32 32, %v662
    %v664 = vshrl.u32 683565275, %v663
    %v665 = vshll.u32 683565275, %v662
    %v666 = vshrl.u32 2475754826, %v663
    %v667 = vor.u32 %v665, %v666
    %v668 = vshll.u32 2475754826, %v662
    %v669 = vshrl.u32 2131351028, %v663
    %v670 = vor.u32 %v668, %v669
    %v671 = vshll.u32 2131351028, %v662
    %v672 = vshrl.u32 2102212464, %v663
    %v673 = vor.u32 %v671, %v672
    %v674 = vshll.u32 2102212464, %v662
    %v675 = vshrl.u32 920167782, %v663
    %v676 = vor.u32 %v674, %v675
    %v677 = vshll.u32 920167782, %v662
    %v678 = vshrl.u32 1326507024, %v663
    %v679 = vor.u32 %v677, %v678
    %vm680 = vcmp.lt.s32.totalorder %v661, 1
    %vm681 = vcmp.lt.s32.totalorder %v661, 2
    %vm682 = vcmp.lt.s32.totalorder %v661, 3
    %vm683 = vcmp.lt.s32.totalorder %v661, 4
    %v684 = vsel %vm680, %v664, %v667
    %v685 = vsel %vm683, %v673, 2102212464
    %v686 = vsel %vm682, %v670, %v685
    %v687 = vsel %vm681, %v684, %v686
    %v688 = vsel %vm680, %v667, %v670
    %v689 = vsel %vm683, %v676, 920167782
    %v690 = vsel %vm682, %v673, %v689
    %v691 = vsel %vm681, %v688, %v690
    %v692 = vsel %vm680, %v670, %v673
    %v693 = vsel %vm683, %v679, 1326507024
    %v694 = vsel %vm682, %v676, %v693
    %v695 = vsel %vm681, %v692, %v694
    %v696 = vshll.u32 %v656, 8
    %v697 = vand.u32 %v696, 65535
    %v698 = vshrl.u32 %v696, 16
    %v699 = vand.u32 %v695, 65535
    %v700 = vshrl.u32 %v695, 16
    %v701 = vmul.u32 %v697, %v699
    %v702 = vmul.u32 %v697, %v700
    %v703 = vmul.u32 %v698, %v699
    %v704 = vmul.u32 %v698, %v700
    %v705 = vshll.u32 %v702, 16
    %v706 = vshrl.u32 %v702, 16
    %v707 = vshll.u32 %v703, 16
    %v708 = vshrl.u32 %v703, 16
    %vm709 = vc.u32 %v701, %v705
    %v710 = vsel %vm709, 1, 0
    %v711 = vadd.s32 %v701, %v705
    %v712 = vadd.s32 %v704, %v710
    %vm713 = vc.u32 %v711, %v707
    %v714 = vsel %vm713, 1, 0
    %v715 = vadd.s32 %v711, %v707
    %v716 = vadd.s32 %v712, %v714
    %v717 = vadd.s32 %v716, %v706
    %v718 = vadd.s32 %v717, %v708
    %v719 = vand.u32 %v696, 65535
    %v720 = vshrl.u32 %v696, 16
    %v721 = vand.u32 %v691, 65535
    %v722 = vshrl.u32 %v691, 16
    %v723 = vmul.u32 %v719, %v721
    %v724 = vmul.u32 %v719, %v722
    %v725 = vmul.u32 %v720, %v721
    %v726 = vmul.u32 %v720, %v722
    %v727 = vshll.u32 %v724, 16
    %v728 = vshrl.u32 %v724, 16
    %v729 = vshll.u32 %v725, 16
    %v730 = vshrl.u32 %v725, 16
    %vm731 = vc.u32 %v723, %v727
    %v732 = vsel %vm731, 1, 0
    %v733 = vadd.s32 %v723, %v727
    %v734 = vadd.s32 %v726, %v732
    %vm735 = vc.u32 %v733, %v729
    %v736 = vsel %vm735, 1, 0
    %v737 = vadd.s32 %v733, %v729
    %v738 = vadd.s32 %v734, %v736
    %v739 = vadd.s32 %v738, %v728
    %v740 = vadd.s32 %v739, %v730
    %v741 = vmul.u32 %v696, %v687
    %v742 = vadd.s32 %v718, %v737
    %vm743 = vc.u32 %v718, %v737
    %v744 = vadd.s32 %v740, 1
    %v745 = vsel %vm743, %v744, %v740
    %v746 = vadd.s32 %v741, %v745
    %v747 = vadd.s32 %v746, 536870912
    %v748 = vshrl.u32 %v747, 30
    %v749 = vshll.u32 %v748, 30
    %v750 = vsub.s32 %v746, %v749
    %vm751 = vcmp.lt.s32.totalorder %v750, 0
    %v752 = vsub.s32 0, %v750
    %v753 = vsel %vm751, %v752, %v750
    %v754 = vclz %v753
    %v755 = vsub.s32 %v754, 2
    %vm756 = vcmp.gt.s32.totalorder 0, %v755
    %v757 = vsel %vm756, 0, %v755
    %v758 = vsub.s32 32, %v757
    %v759 = vshll.u32 %v750, %v757
    %v760 = vshrl.u32 %v742, %v758
    %v761 = vor.u32 %v759, %v760
    %v762 = vsub.s32 4294967266, %v757
    %v763 = vadd.s32 %v762, 127
    %v764 = vshll.u32 %v763, 23
    %v765 = vor.u32 4788187, %v764
    %v766 = vand.u32 2147483647, %v765
    %v768 = vcvt.s32.f32 %v761
    %v769 = vmul.f32 %v768, %v766
    %v770 = vxor.u32 %v769, 2147483648
    %v771 = vsel %vm650, %v770, %v769
    %v772 = vsub.s32 4, %v748
    %v773 = vsel %vm650, %v772, %v748
    %v774 = vsel %vm649, %v647, %v771
    %v775 = vsel %vm649, 0, %v773
    %v776 = vmul.f32 %v774, %v774
    %v777 = vmul.f32 %v776, -0.001358992
    %v778 = vadd.f32 %v777, 0.041655596
    %v779 = vmul.f32 %v776, %v778
    %v780 = vadd.f32 %v779, -0.4999988
    %v781 = vmul.f32 %v776, %v780
    %v782 = vadd.f32 1.0, %v781
    %v783 = vmul.f32 %v774, %v774
    %v784 = vmul.f32 %v783, -0.00019511016
    %v785 = vadd.f32 %v784, 0.008332121
    %v786 = vmul.f32 %v783, %v785
    %v787 = vadd.f32 %v786, -0.16666654
    %v788 = vmul.f32 %v783, %v787
    %v789 = vadd.f32 %v788, 1.0
    %v790 = vmul.f32 %v789, %v774
    %vm791 = vweird.f32 %v647
    %v792 = vadd.s32 %v775, 3
    %v793 = vand.u32 %v792, 3
    %vm794 = vcmp.lt.s32.totalorder %v793, 2
    %vm795 = vcmp.eq.s32.totalorder %v793, 0
    %v796 = vxor.u32 %v790, 2147483648
    %v797 = vsel %vm795, %v782, %v796
    %vm798 = vcmp.eq.s32.totalorder %v793, 2
    %v799 = vxor.u32 %v782, 2147483648
    %v800 = vsel %vm798, %v799, %v790
    %v801 = vsel %vm794, %v797, %v800
    %v802 = vsel %vm791, nan, %v801
    %803 = vst [vmem:[#allocation2 + $0xf] sm:$0x3f] %v802
    %v804 = vand.u32 2147483647, %v647
    %vm805 = vcmp.le.f32.partialorder %v804, 0.7853982
    %vm806 = vcmp.lt.s32.totalorder %v647, 0
    %v807 = vand.u32 %v647, 2139095040
    %v808 = vshrl.u32 %v807, 23
    %v809 = vsub.s32 %v808, 127
    %v810 = vand.u32 2147483647, %v647
    %v811 = vand.u32 %v810, 8388607
    %v812 = vor.u32 %v811, 8388608
    %v813 = vsub.s32 0, %v812
    %v814 = vadd.s32 %v809, 1
    %vm815 = vcmp.gt.s32.totalorder %v814, 0
    %v816 = vsel %vm815, %v814, 0
    %v817 = vshrl.u32 %v816, 5
    %v818 = vand.u32 %v816, 31
    %v819 = vsub.s32 32, %v818
    %v820 = vshrl.u32 683565275, %v819
    %v821 = vshll.u32 683565275, %v818
    %v822 = vshrl.u32 2475754826, %v819
    %v823 = vor.u32 %v821, %v822
    %v824 = vshll.u32 2475754826, %v818
    %v825 = vshrl.u32 2131351028, %v819
    %v826 = vor.u32 %v824, %v825
    %v827 = vshll.u32 2131351028, %v818
    %v828 = vshrl.u32 2102212464, %v819
    %v829 = vor.u32 %v827, %v828
    %v830 = vshll.u32 2102212464, %v818
    %v831 = vshrl.u32 920167782, %v819
    %v832 = vor.u32 %v830, %v831
    %v833 = vshll.u32 920167782, %v818
    %v834 = vshrl.u32 1326507024, %v819
    %v835 = vor.u32 %v833, %v834
    %vm836 = vcmp.lt.s32.totalorder %v817, 1
    %vm837 = vcmp.lt.s32.totalorder %v817, 2
    %vm838 = vcmp.lt.s32.totalorder %v817, 3
    %vm839 = vcmp.lt.s32.totalorder %v817, 4
    %v840 = vsel %vm836, %v820, %v823
    %v841 = vsel %vm839, %v829, 2102212464
    %v842 = vsel %vm838, %v826, %v841
    %v843 = vsel %vm837, %v840, %v842
    %v844 = vsel %vm836, %v823, %v826
    %v845 = vsel %vm839, %v832, 920167782
    %v846 = vsel %vm838, %v829, %v845
    %v847 = vsel %vm837, %v844, %v846
    %v848 = vsel %vm836, %v826, %v829
    %v849 = vsel %vm839, %v835, 1326507024
    %v850 = vsel %vm838, %v832, %v849
    %v851 = vsel %vm837, %v848, %v850
    %v852 = vshll.u32 %v812, 8
    %v853 = vand.u32 %v852, 65535
    %v854 = vshrl.u32 %v852, 16
    %v855 = vand.u32 %v851, 65535
    %v856 = vshrl.u32 %v851, 16
    %v857 = vmul.u32 %v853, %v855
    %v858 = vmul.u32 %v853, %v856
    %v859 = vmul.u32 %v854, %v855
    %v860 = vmul.u32 %v854, %v856
    %v861 = vshll.u32 %v858, 16
    %v862 = vshrl.u32 %v858, 16
    %v863 = vshll.u32 %v859, 16
    %v864 = vshrl.u32 %v859, 16
    %vm865 = vc.u32 %v857, %v861
    %v866 = vsel %vm865, 1, 0
    %v867 = vadd.s32 %v857, %v861
    %v868 = vadd.s32 %v860, %v866
    %vm869 = vc.u32 %v867, %v863
    %v870 = vsel %vm869, 1, 0
    %v871 = vadd.s32 %v867, %v863
    %v872 = vadd.s32 %v868, %v870
    %v873 = vadd.s32 %v872, %v862
    %v874 = vadd.s32 %v873, %v864
    %v875 = vand.u32 %v852, 65535
    %v876 = vshrl.u32 %v852, 16
    %v877 = vand.u32 %v847, 65535
    %v878 = vshrl.u32 %v847, 16
    %v879 = vmul.u32 %v875, %v877
    %v880 = vmul.u32 %v875, %v878
    %v881 = vmul.u32 %v876, %v877
    %v882 = vmul.u32 %v876, %v878
    %v883 = vshll.u32 %v880, 16
    %v884 = vshrl.u32 %v880, 16
    %v885 = vshll.u32 %v881, 16
    %v886 = vshrl.u32 %v881, 16
    %vm887 = vc.u32 %v879, %v883
    %v888 = vsel %vm887, 1, 0
    %v889 = vadd.s32 %v879, %v883
    %v890 = vadd.s32 %v882, %v888
    %vm891 = vc.u32 %v889, %v885
    %v892 = vsel %vm891, 1, 0
    %v893 = vadd.s32 %v889, %v885
    %v894 = vadd.s32 %v890, %v892
    %v895 = vadd.s32 %v894, %v884
    %v896 = vadd.s32 %v895, %v886
    %v897 = vmul.u32 %v852, %v843
    %v898 = vadd.s32 %v874, %v893
    %vm899 = vc.u32 %v874, %v893
    %v900 = vadd.s32 %v896, 1
    %v901 = vsel %vm899, %v900, %v896
    %v902 = vadd.s32 %v897, %v901
    %v903 = vadd.s32 %v902, 536870912
    %v904 = vshrl.u32 %v903, 30
    %v905 = vshll.u32 %v904, 30
    %v906 = vsub.s32 %v902, %v905
    %vm907 = vcmp.lt.s32.totalorder %v906, 0
    %v908 = vsub.s32 0, %v906
    %v909 = vsel %vm907, %v908, %v906
    %v910 = vclz %v909
    %v911 = vsub.s32 %v910, 2
    %vm912 = vcmp.gt.s32.totalorder 0, %v911
    %v913 = vsel %vm912, 0, %v911
    %v914 = vsub.s32 32, %v913
    %v915 = vshll.u32 %v906, %v913
    %v916 = vshrl.u32 %v898, %v914
    %v917 = vor.u32 %v915, %v916
    %v918 = vsub.s32 4294967266, %v913
    %v919 = vadd.s32 %v918, 127
    %v920 = vshll.u32 %v919, 23
    %v921 = vor.u32 4788187, %v920
    %v922 = vand.u32 2147483647, %v921
    %v924 = vcvt.s32.f32 %v917
    %v925 = vmul.f32 %v924, %v922
    %v926 = vxor.u32 %v925, 2147483648
    %v927 = vsel %vm806, %v926, %v925
    %v928 = vsub.s32 4, %v904
    %v929 = vsel %vm806, %v928, %v904
    %v930 = vsel %vm805, %v647, %v927
    %v931 = vsel %vm805, 0, %v929
    %v932 = vmul.f32 %v930, %v930
    %v933 = vmul.f32 %v932, -0.001358992
    %v934 = vadd.f32 %v933, 0.041655596
    %v935 = vmul.f32 %v932, %v934
    %v936 = vadd.f32 %v935, -0.4999988
    %v937 = vmul.f32 %v932, %v936
    %v938 = vadd.f32 1.0, %v937
    %v939 = vmul.f32 %v930, %v930
    %v940 = vmul.f32 %v939, -0.00019511016
    %v941 = vadd.f32 %v940, 0.008332121
    %v942 = vmul.f32 %v939, %v941
    %v943 = vadd.f32 %v942, -0.16666654
    %v944 = vmul.f32 %v939, %v943
    %v945 = vadd.f32 %v944, 1.0
    %v946 = vmul.f32 %v945, %v930
    %vm947 = vweird.f32 %v647
    %v948 = vand.u32 %v931, 3
    %vm949 = vcmp.lt.s32.totalorder %v948, 2
    %vm950 = vcmp.eq.s32.totalorder %v948, 0
    %v951 = vxor.u32 %v946, 2147483648
    %v952 = vsel %vm950, %v938, %v951
    %vm953 = vcmp.eq.s32.totalorder %v948, 2
    %v954 = vxor.u32 %v938, 2147483648
    %v955 = vsel %vm953, %v954, %v946
    %v956 = vsel %vm949, %v952, %v955
    %v957 = vsel %vm947, nan, %v956
    %958 = vst [vmem:[#allocation2 + $0x21] sm:$0x3f] %v957
    // Predicated region
    $region10: #{tpu_custom_call.1} parent=1 // pred_check
      _
    $region11: #{tpu_custom_call.1} parent=1 // pred_check_branch
      %960 = sbr.rel (0) target = $region13
    $region12: #{tpu_custom_call.1} parent=1 // pred_region
      %962 = vsyncadd [#allocation3], 0
      %s963 = sshll.u32 [#allocation2], 4
      %s964 = int_to_ptr.vmem [resolvable:$true] %s963
      %s965 = sshll.u32 %s2, 4
      %s966 = int_to_ptr.hbm [resolvable:$true] %s965
      %971 = dma.vmem_to_hbm [thread:$0]  %s964, 640, %s966, [#allocation3], 128, 128, 8
    $region13: #{tpu_custom_call.1} parent=1 // pred_fallthru
      _
    // Predicated region
    $region14: #{tpu_custom_call.1} parent=1 // pred_check
      _
    $region15: #{tpu_custom_call.1} parent=1 // pred_check_branch
      %973 = sbr.rel (0) target = $region17
    $region16: #{tpu_custom_call.1} parent=1 // pred_region
      %975 = dma.done [#allocation3], 640
    $region17: #{tpu_custom_call.1} parent=1 // pred_fallthru
      _
    %976 = vsyncpa [#allocation3], 1

</llo_original>
